<compile_context>
chip_gen: v7x
topology: tpu7x:2x2x1
jax: 0.10.0
libtpu: 0.0.40
codegen_flags: <defaults>
</compile_context>

<pallas_src>
import functools

import jax
import jax.numpy as jnp
from jax.experimental import pallas as pl
from jax.experimental.pallas import tpu as pltpu


def _round_up(x, m):
    return ((x + m - 1) // m) * m


def _class_head_kernel(x_ref, w1_ref, b1_ref, w2_ref, b2_ref, out_ref, *, inv_d):
    # x_ref : (TM, D)   input dtype (f32 or bf16); no padding columns
    # w1_ref: (D, Hp)   bf16  (LayerNorm affine already folded in)
    # b1_ref: (1, Hp)   f32
    # w2_ref: (Hp, Cp)  bf16  (output cols >= true C are zero-padded)
    # b2_ref: (1, Cp)   f32
    # out   : (TM, Cp)  bf16
    x = x_ref[...].astype(jnp.float32)

    # --- LayerNorm (eps=1e-5, biased variance), two-pass centered form ---
    mean = jnp.sum(x, axis=-1, keepdims=True) * inv_d
    xc = x - mean
    var = jnp.sum(xc * xc, axis=-1, keepdims=True) * inv_d
    xn = xc * jax.lax.rsqrt(var + 1e-5)

    # --- Linear(D -> 256) with folded LayerNorm affine; bf16 MXU / f32 acc ---
    h = jnp.dot(xn.astype(jnp.bfloat16), w1_ref[...],
                preferred_element_type=jnp.float32) + b1_ref[...]

    # --- Dropout (eval mode -> identity) ---

    # --- SiLU ---
    h = h * jax.nn.sigmoid(h)

    # --- Linear(256 -> n_out), lane-dense padded output, bf16 writeback ---
    y = jnp.dot(h.astype(jnp.bfloat16), w2_ref[...],
                preferred_element_type=jnp.float32) + b2_ref[...]

    out_ref[...] = y.astype(out_ref.dtype)


def prepare_params(params):
    """One-time parameter preprocessing (affine fold, lane padding, bf16 cast).

    Hoisted out of the per-call path so inference calls touch the prepared
    weights only once.
    """
    gamma = params["ln_gamma"].astype(jnp.float32)
    beta = params["ln_beta"].astype(jnp.float32)
    w1 = params["w1"].astype(jnp.float32)
    b1 = params["b1"].astype(jnp.float32)
    w2 = params["w2"].astype(jnp.float32)
    b2 = params["b2"].astype(jnp.float32)

    D, H = w1.shape
    C = w2.shape[1]
    Hp = _round_up(H, 128)          # H = 256 -> already aligned
    Cp = _round_up(max(C, 1), 128)  # lane-dense output (v6e/v7x: do NOT widen past 128)

    # Fold LayerNorm affine into the first Linear: (xn*g + b) @ w1 + b1
    w1f = gamma[:, None] * w1                       # (D, H)
    b1f = beta @ w1 + b1                            # (H,)

    return {
        "w1p": jnp.pad(w1f, ((0, 0), (0, Hp - H))).astype(jnp.bfloat16),        # (D, Hp)
        "b1p": jnp.pad(b1f, ((0, Hp - H),)).reshape(1, Hp).astype(jnp.float32),  # (1, Hp)
        "w2p": jnp.pad(w2, ((0, Hp - H), (0, Cp - C))).astype(jnp.bfloat16),     # (Hp, Cp)
        "b2p": jnp.pad(b2, ((0, Cp - C),)).reshape(1, Cp).astype(jnp.float32),   # (1, Cp)
        "D": int(D), "Hp": int(Hp), "C": int(C), "Cp": int(Cp),
    }


def _weight_spec(shape, single_buffer):
    if single_buffer:
        # Constant index_map -> block never changes; one VMEM buffer is enough.
        return pl.BlockSpec(shape, lambda i: (0, 0), pipeline_mode=pl.Buffered(1))
    return pl.BlockSpec(shape, lambda i: (0, 0))


def simple_classification_forward(image_features, prepared, *, max_rows_per_tile=1024):
    """image_features: (B, S, D) f32 or bf16. Returns f32 logits, shape (B, n_out)
    when S == 1 (mirrors torch .squeeze(1))."""
    D, Hp, C, Cp = prepared["D"], prepared["Hp"], prepared["C"], prepared["Cp"]
    w1p, b1p, w2p, b2p = prepared["w1p"], prepared["b1p"], prepared["w2p"], prepared["b2p"]

    B, S, Dx = image_features.shape
    assert Dx == D, f"feature dim mismatch: {Dx} vs {D}"
    N = B * S

    # Stream x in its native dtype (bf16 upstream activations stream as bf16;
    # we do not add a standalone f32->bf16 cast pass).  No row/feature padding.
    x2d = image_features.reshape(N, D)
    x_bytes = x2d.dtype.itemsize
    out_bytes = 2  # bf16 writeback

    # --- Row tile sized from an explicit VMEM budget -------------------------
    # Streamed per-step VMEM: double-buffered x tile + double-buffered out tile.
    per_row_stream = 2 * (D * x_bytes + Cp * out_bytes)
    stream_budget = 24 << 20                      # fits under v7x scoped VMEM w/ headroom
    tm_cap = max(8, (stream_budget // per_row_stream) // 8 * 8)
    tm = max(8, (min(max_rows_per_tile, tm_cap) // 8) * 8)
    if tm >= N:
        tm = N      # single block; block dim == full array dim is always legal

    grid = (pl.cdiv(N, tm),)

    weight_bytes = (D * Hp * 2) + (Hp * 4) + (Hp * Cp * 2) + (Cp * 4)
    stream_bytes = 2 * tm * (D * x_bytes + Cp * out_bytes)
    vmem_need = 2 * weight_bytes + stream_bytes   # conservative: assume 2 weight bufs
    vmem_limit = int(min(40 << 20, max(16 << 20, 1.3 * vmem_need)))

    cost = pl.CostEstimate(
        flops=2 * N * (D * Hp + Hp * Cp),
        transcendentals=N * Hp,                    # sigmoid in SiLU
        bytes_accessed=int(N * D * x_bytes + weight_bytes + N * Cp * out_bytes),
    )

    kernel = functools.partial(_class_head_kernel, inv_d=1.0 / float(D))

    def _call(single_buffer_weights):
        return pl.pallas_call(
            kernel,
            out_shape=jax.ShapeDtypeStruct((N, Cp), jnp.bfloat16),
            grid_spec=pl.GridSpec(
                grid=grid,
                in_specs=[
                    pl.BlockSpec((tm, D), lambda i: (i, 0)),          # x rows: streamed
                    _weight_spec((D, Hp), single_buffer_weights),     # w1: resident
                    _weight_spec((1, Hp), single_buffer_weights),     # b1: resident
                    _weight_spec((Hp, Cp), single_buffer_weights),    # w2: resident
                    _weight_spec((1, Cp), single_buffer_weights),     # b2: resident
                ],
                out_specs=pl.BlockSpec((tm, Cp), lambda i: (i, 0)),
            ),
            compiler_params=pltpu.CompilerParams(
                dimension_semantics=("parallel",),   # shard row tiles across TCs
                vmem_limit_bytes=vmem_limit,
            ),
            cost_estimate=cost,
        )(x2d, w1p, b1p, w2p, b2p)

    try:
        # Single-buffer the never-refetched weights (VMEM win, esp. v7x).
        out2d = _call(True)
    except Exception:   # pipeline_mode=Buffered(1) unsupported -> default buffering
        out2d = _call(False)

    logits = out2d[:, :C].astype(jnp.float32).reshape(B, S, C)
    # torch squeeze(1): drop axis 1 only if it is size 1
    if S == 1:
        logits = logits[:, 0, :]
    return logits


def init_params(key, input_dim, n_out=8, hidden=256):
    k1, k2, k3, k4, k5, k6 = jax.random.split(key, 6)
    lim1 = 1.0 / jnp.sqrt(input_dim)
    lim2 = 1.0 / jnp.sqrt(hidden)
    return {
        # Non-trivial affine so the gamma/beta -> w1/b1 folding is exercised.
        "ln_gamma": 1.0 + 0.1 * jax.random.normal(k5, (input_dim,), jnp.float32),
        "ln_beta": 0.1 * jax.random.normal(k6, (input_dim,), jnp.float32),
        "w1": jax.random.uniform(k1, (input_dim, hidden), jnp.float32, -lim1, lim1),
        "b1": jax.random.uniform(k2, (hidden,), jnp.float32, -lim1, lim1),
        "w2": jax.random.uniform(k3, (hidden, n_out), jnp.float32, -lim2, lim2),
        "b2": jax.random.uniform(k4, (n_out,), jnp.float32, -lim2, lim2),
    }


if __name__ == "__main__":
    key = jax.random.PRNGKey(0)
    k_params, k_x = jax.random.split(key)

    B, S, D, n_out = 2, 1, 32, 8
    params = init_params(k_params, input_dim=D, n_out=n_out)
    x = jax.random.normal(k_x, (B, S, D), jnp.float32)

    prepared = prepare_params(params)
    logits = simple_classification_forward(x, prepared)
    logits = jax.block_until_ready(logits)

    # Reference in plain JAX f32 (unfolded / unpadded).  Tolerance accounts for
    # bf16 MXU operands and the bf16 output writeback.
    xn = (x - x.mean(-1, keepdims=True)) * jax.lax.rsqrt(x.var(-1, keepdims=True) + 1e-5)
    xn = xn * params["ln_gamma"] + params["ln_beta"]
    h = xn @ params["w1"] + params["b1"]
    h = h * jax.nn.sigmoid(h)
    ref = (h @ params["w2"] + params["b2"])[:, 0, :]

    assert logits.shape == (B, n_out), f"bad shape {logits.shape}"
    max_err = jnp.max(jnp.abs(logits - ref))
    assert jnp.allclose(logits, ref, atol=3e-2, rtol=3e-2), f"max abs err {max_err}"

    print("KERNEL_OK")
</pallas_src>

<mosaic_0001>
module attributes {stable_mosaic.version = 11 : i64} {
  func.func @_class_head_kernel(%arg0: i32, %arg1: memref<2x32xf32, #tpu.memory_space<vmem>>, %arg2: memref<32x256xbf16, #tpu.memory_space<vmem>>, %arg3: memref<1x256xf32, #tpu.memory_space<vmem>>, %arg4: memref<256x128xbf16, #tpu.memory_space<vmem>>, %arg5: memref<1x128xf32, #tpu.memory_space<vmem>>, %arg6: memref<2x128xbf16, #tpu.memory_space<vmem>>) attributes {dimension_semantics = [#tpu.dimension_semantics<parallel>], iteration_bounds = array<i64: 1>, scalar_prefetch = 0 : i64, scratch_operands = 0 : i64, tpu.core_type = #tpu.core_type<tc>, window_params = [{transform_indices = @transform_0, window_bounds = array<i64: 2, 32>}, {pipeline_mode = #tpu.pipeline_mode<synchronous>, transform_indices = @transform_1, window_bounds = array<i64: 32, 256>}, {pipeline_mode = #tpu.pipeline_mode<synchronous>, transform_indices = @transform_2, window_bounds = array<i64: 1, 256>}, {pipeline_mode = #tpu.pipeline_mode<synchronous>, transform_indices = @transform_3, window_bounds = array<i64: 256, 128>}, {pipeline_mode = #tpu.pipeline_mode<synchronous>, transform_indices = @transform_4, window_bounds = array<i64: 1, 128>}, {transform_indices = @transform_5, window_bounds = array<i64: 2, 128>}]} {
    %c0 = arith.constant 0 : index
    %c0_0 = arith.constant 0 : index
    %0 = vector.load %arg1[%c0, %c0_0] : memref<2x32xf32, #tpu.memory_space<vmem>>, vector<2x32xf32>
    %cst = arith.constant dense<0.000000e+00> : vector<2xf32>
    %1 = vector.multi_reduction <add>, %0, %cst [1] : vector<2x32xf32> to vector<2xf32>
    %2 = vector.shape_cast %1 : vector<2xf32> to vector<2x1xf32>
    %cst_1 = arith.constant 3.125000e-02 : f32
    %3 = vector.broadcast %cst_1 : f32 to vector<2x1xf32>
    %4 = arith.mulf %2, %3 : vector<2x1xf32>
    %5 = vector.broadcast %4 : vector<2x1xf32> to vector<2x32xf32>
    %6 = arith.subf %0, %5 : vector<2x32xf32>
    %7 = arith.mulf %6, %6 : vector<2x32xf32>
    %cst_2 = arith.constant dense<0.000000e+00> : vector<2xf32>
    %8 = vector.multi_reduction <add>, %7, %cst_2 [1] : vector<2x32xf32> to vector<2xf32>
    %9 = vector.shape_cast %8 : vector<2xf32> to vector<2x1xf32>
    %cst_3 = arith.constant 3.125000e-02 : f32
    %10 = vector.broadcast %cst_3 : f32 to vector<2x1xf32>
    %11 = arith.mulf %9, %10 : vector<2x1xf32>
    %cst_4 = arith.constant 9.99999974E-6 : f32
    %12 = vector.broadcast %cst_4 : f32 to vector<2x1xf32>
    %13 = arith.addf %11, %12 : vector<2x1xf32>
    %14 = math.rsqrt %13 : vector<2x1xf32>
    %15 = vector.broadcast %14 : vector<2x1xf32> to vector<2x32xf32>
    %16 = arith.mulf %6, %15 : vector<2x32xf32>
    %17 = arith.truncf %16 : vector<2x32xf32> to vector<2x32xbf16>
    %c0_5 = arith.constant 0 : index
    %c0_6 = arith.constant 0 : index
    %18 = vector.load %arg2[%c0_5, %c0_6] : memref<32x256xbf16, #tpu.memory_space<vmem>>, vector<32x256xbf16>
    %cst_7 = arith.constant dense<0.000000e+00> : vector<2x256xf32>
    %19 = tpu.matmul %17, %18, %cst_7 {dimension_numbers = #tpu.dot_dimension_numbers<[1], [0], [0], [1], [0, 0, 1, 1], [], []>} : vector<2x32xbf16>, vector<32x256xbf16>, vector<2x256xf32> -> vector<2x256xf32>
    %c0_8 = arith.constant 0 : index
    %c0_9 = arith.constant 0 : index
    %20 = vector.load %arg3[%c0_8, %c0_9] : memref<1x256xf32, #tpu.memory_space<vmem>>, vector<1x256xf32>
    %21 = vector.broadcast %20 : vector<1x256xf32> to vector<2x256xf32>
    %22 = arith.addf %19, %21 : vector<2x256xf32>
    %23 = arith.negf %22 : vector<2x256xf32>
    %24 = math.exp %23 : vector<2x256xf32>
    %cst_10 = arith.constant 1.000000e+00 : f32
    %25 = vector.broadcast %cst_10 : f32 to vector<2x256xf32>
    %26 = arith.addf %25, %24 : vector<2x256xf32>
    %27 = arith.divf %25, %26 : vector<2x256xf32>
    %28 = arith.mulf %22, %27 : vector<2x256xf32>
    %29 = arith.truncf %28 : vector<2x256xf32> to vector<2x256xbf16>
    %c0_11 = arith.constant 0 : index
    %c0_12 = arith.constant 0 : index
    %30 = vector.load %arg4[%c0_11, %c0_12] : memref<256x128xbf16, #tpu.memory_space<vmem>>, vector<256x128xbf16>
    %cst_13 = arith.constant dense<0.000000e+00> : vector<2x128xf32>
    %31 = tpu.matmul %29, %30, %cst_13 {dimension_numbers = #tpu.dot_dimension_numbers<[1], [0], [0], [1], [0, 0, 1, 1], [], []>} : vector<2x256xbf16>, vector<256x128xbf16>, vector<2x128xf32> -> vector<2x128xf32>
    %c0_14 = arith.constant 0 : index
    %c0_15 = arith.constant 0 : index
    %32 = vector.load %arg5[%c0_14, %c0_15] : memref<1x128xf32, #tpu.memory_space<vmem>>, vector<1x128xf32>
    %33 = vector.broadcast %32 : vector<1x128xf32> to vector<2x128xf32>
    %34 = arith.addf %31, %33 : vector<2x128xf32>
    %35 = arith.truncf %34 : vector<2x128xf32> to vector<2x128xbf16>
    %c0_16 = arith.constant 0 : index
    %c0_17 = arith.constant 0 : index
    %36 = vector.load %arg6[%c0_16, %c0_17] : memref<2x128xbf16, #tpu.memory_space<vmem>>, vector<2x128xbf16>
    tpu.vector_store %arg6[%c0_16, %c0_17], %35 {strides = array<i32>} : memref<2x128xbf16, #tpu.memory_space<vmem>>, vector<2x128xbf16>,
    return
  }
  func.func @transform_0(%arg0: i32) -> (i32, i32) {
    %c0_i32 = arith.constant 0 : i32
    %c0_i32_0 = arith.constant 0 : i32
    return %arg0, %c0_i32 : i32, i32
  }
  func.func @transform_1(%arg0: i32) -> (i32, i32) {
    %c0_i32 = arith.constant 0 : i32
    %c0_i32_0 = arith.constant 0 : i32
    %c0_i32_1 = arith.constant 0 : i32
    return %c0_i32, %c0_i32_0 : i32, i32
  }
  func.func @transform_2(%arg0: i32) -> (i32, i32) {
    %c0_i32 = arith.constant 0 : i32
    %c0_i32_0 = arith.constant 0 : i32
    %c0_i32_1 = arith.constant 0 : i32
    return %c0_i32, %c0_i32_0 : i32, i32
  }
  func.func @transform_3(%arg0: i32) -> (i32, i32) {
    %c0_i32 = arith.constant 0 : i32
    %c0_i32_0 = arith.constant 0 : i32
    %c0_i32_1 = arith.constant 0 : i32
    return %c0_i32, %c0_i32_0 : i32, i32
  }
  func.func @transform_4(%arg0: i32) -> (i32, i32) {
    %c0_i32 = arith.constant 0 : i32
    %c0_i32_0 = arith.constant 0 : i32
    %c0_i32_1 = arith.constant 0 : i32
    return %c0_i32, %c0_i32_0 : i32, i32
  }
  func.func @transform_5(%arg0: i32) -> (i32, i32) {
    %c0_i32 = arith.constant 0 : i32
    %c0_i32_0 = arith.constant 0 : i32
    return %arg0, %c0_i32 : i32, i32
  }
}

module attributes {stable_mosaic.version = 11 : i64} {
  func.func @_class_head_kernel(%arg0: i32, %arg1: memref<2x32xf32, #tpu.memory_space<vmem>>, %arg2: memref<32x256xbf16, #tpu.memory_space<vmem>>, %arg3: memref<1x256xf32, #tpu.memory_space<vmem>>, %arg4: memref<256x128xbf16, #tpu.memory_space<vmem>>, %arg5: memref<1x128xf32, #tpu.memory_space<vmem>>, %arg6: memref<2x128xbf16, #tpu.memory_space<vmem>>) attributes {dimension_semantics = [#tpu.dimension_semantics<parallel>], iteration_bounds = array<i64: 1>, scalar_prefetch = 0 : i64, scratch_operands = 0 : i64, tpu.core_type = #tpu.core_type<tc>, window_params = [{transform_indices = @transform_0, window_bounds = array<i64: 2, 32>}, {pipeline_mode = #tpu.pipeline_mode<synchronous>, transform_indices = @transform_1, window_bounds = array<i64: 32, 256>}, {pipeline_mode = #tpu.pipeline_mode<synchronous>, transform_indices = @transform_2, window_bounds = array<i64: 1, 256>}, {pipeline_mode = #tpu.pipeline_mode<synchronous>, transform_indices = @transform_3, window_bounds = array<i64: 256, 128>}, {pipeline_mode = #tpu.pipeline_mode<synchronous>, transform_indices = @transform_4, window_bounds = array<i64: 1, 128>}, {transform_indices = @transform_5, window_bounds = array<i64: 2, 128>}]} {
    %c0 = arith.constant 0 : index
    %c0_0 = arith.constant 0 : index
    %0 = vector.load %arg1[%c0, %c0_0] : memref<2x32xf32, #tpu.memory_space<vmem>>, vector<2x32xf32>
    %cst = arith.constant dense<0.000000e+00> : vector<2xf32>
    %1 = vector.multi_reduction <add>, %0, %cst [1] : vector<2x32xf32> to vector<2xf32>
    %2 = vector.shape_cast %1 : vector<2xf32> to vector<2x1xf32>
    %cst_1 = arith.constant 3.125000e-02 : f32
    %3 = vector.broadcast %cst_1 : f32 to vector<2x1xf32>
    %4 = arith.mulf %2, %3 : vector<2x1xf32>
    %5 = vector.broadcast %4 : vector<2x1xf32> to vector<2x32xf32>
    %6 = arith.subf %0, %5 : vector<2x32xf32>
    %7 = arith.mulf %6, %6 : vector<2x32xf32>
    %cst_2 = arith.constant dense<0.000000e+00> : vector<2xf32>
    %8 = vector.multi_reduction <add>, %7, %cst_2 [1] : vector<2x32xf32> to vector<2xf32>
    %9 = vector.shape_cast %8 : vector<2xf32> to vector<2x1xf32>
    %cst_3 = arith.constant 3.125000e-02 : f32
    %10 = vector.broadcast %cst_3 : f32 to vector<2x1xf32>
    %11 = arith.mulf %9, %10 : vector<2x1xf32>
    %cst_4 = arith.constant 9.99999974E-6 : f32
    %12 = vector.broadcast %cst_4 : f32 to vector<2x1xf32>
    %13 = arith.addf %11, %12 : vector<2x1xf32>
    %14 = math.rsqrt %13 : vector<2x1xf32>
    %15 = vector.broadcast %14 : vector<2x1xf32> to vector<2x32xf32>
    %16 = arith.mulf %6, %15 : vector<2x32xf32>
    %17 = arith.truncf %16 : vector<2x32xf32> to vector<2x32xbf16>
    %c0_5 = arith.constant 0 : index
    %c0_6 = arith.constant 0 : index
    %18 = vector.load %arg2[%c0_5, %c0_6] : memref<32x256xbf16, #tpu.memory_space<vmem>>, vector<32x256xbf16>
    %cst_7 = arith.constant dense<0.000000e+00> : vector<2x256xf32>
    %19 = tpu.matmul %17, %18, %cst_7 {dimension_numbers = #tpu.dot_dimension_numbers<[1], [0], [0], [1], [0, 0, 1, 1], [], []>} : vector<2x32xbf16>, vector<32x256xbf16>, vector<2x256xf32> -> vector<2x256xf32>
    %c0_8 = arith.constant 0 : index
    %c0_9 = arith.constant 0 : index
    %20 = vector.load %arg3[%c0_8, %c0_9] : memref<1x256xf32, #tpu.memory_space<vmem>>, vector<1x256xf32>
    %21 = vector.broadcast %20 : vector<1x256xf32> to vector<2x256xf32>
    %22 = arith.addf %19, %21 : vector<2x256xf32>
    %23 = arith.negf %22 : vector<2x256xf32>
    %24 = math.exp %23 : vector<2x256xf32>
    %cst_10 = arith.constant 1.000000e+00 : f32
    %25 = vector.broadcast %cst_10 : f32 to vector<2x256xf32>
    %26 = arith.addf %25, %24 : vector<2x256xf32>
    %27 = arith.divf %25, %26 : vector<2x256xf32>
    %28 = arith.mulf %22, %27 : vector<2x256xf32>
    %29 = arith.truncf %28 : vector<2x256xf32> to vector<2x256xbf16>
    %c0_11 = arith.constant 0 : index
    %c0_12 = arith.constant 0 : index
    %30 = vector.load %arg4[%c0_11, %c0_12] : memref<256x128xbf16, #tpu.memory_space<vmem>>, vector<256x128xbf16>
    %cst_13 = arith.constant dense<0.000000e+00> : vector<2x128xf32>
    %31 = tpu.matmul %29, %30, %cst_13 {dimension_numbers = #tpu.dot_dimension_numbers<[1], [0], [0], [1], [0, 0, 1, 1], [], []>} : vector<2x256xbf16>, vector<256x128xbf16>, vector<2x128xf32> -> vector<2x128xf32>
    %c0_14 = arith.constant 0 : index
    %c0_15 = arith.constant 0 : index
    %32 = vector.load %arg5[%c0_14, %c0_15] : memref<1x128xf32, #tpu.memory_space<vmem>>, vector<1x128xf32>
    %33 = vector.broadcast %32 : vector<1x128xf32> to vector<2x128xf32>
    %34 = arith.addf %31, %33 : vector<2x128xf32>
    %35 = arith.truncf %34 : vector<2x128xf32> to vector<2x128xbf16>
    %c0_16 = arith.constant 0 : index
    %c0_17 = arith.constant 0 : index
    %36 = vector.load %arg6[%c0_16, %c0_17] : memref<2x128xbf16, #tpu.memory_space<vmem>>, vector<2x128xbf16>
    tpu.vector_store %arg6[%c0_16, %c0_17], %35 {strides = array<i32>} : memref<2x128xbf16, #tpu.memory_space<vmem>>, vector<2x128xbf16>,
    return
  }
  func.func @transform_0(%arg0: i32) -> (i32, i32) {
    %c0_i32 = arith.constant 0 : i32
    %c0_i32_0 = arith.constant 0 : i32
    return %arg0, %c0_i32 : i32, i32
  }
  func.func @transform_1(%arg0: i32) -> (i32, i32) {
    %c0_i32 = arith.constant 0 : i32
    %c0_i32_0 = arith.constant 0 : i32
    %c0_i32_1 = arith.constant 0 : i32
    return %c0_i32, %c0_i32_0 : i32, i32
  }
  func.func @transform_2(%arg0: i32) -> (i32, i32) {
    %c0_i32 = arith.constant 0 : i32
    %c0_i32_0 = arith.constant 0 : i32
    %c0_i32_1 = arith.constant 0 : i32
    return %c0_i32, %c0_i32_0 : i32, i32
  }
  func.func @transform_3(%arg0: i32) -> (i32, i32) {
    %c0_i32 = arith.constant 0 : i32
    %c0_i32_0 = arith.constant 0 : i32
    %c0_i32_1 = arith.constant 0 : i32
    return %c0_i32, %c0_i32_0 : i32, i32
  }
  func.func @transform_4(%arg0: i32) -> (i32, i32) {
    %c0_i32 = arith.constant 0 : i32
    %c0_i32_0 = arith.constant 0 : i32
    %c0_i32_1 = arith.constant 0 : i32
    return %c0_i32, %c0_i32_0 : i32, i32
  }
  func.func @transform_5(%arg0: i32) -> (i32, i32) {
    %c0_i32 = arith.constant 0 : i32
    %c0_i32_0 = arith.constant 0 : i32
    return %arg0, %c0_i32 : i32, i32
  }
}

</mosaic_0001>

<llo_original>
// kernel: tpu_custom_call.1
$region0: #{tpu_custom_call.1}
  #allocation0 [shape = 'u32[]', space=smem, size = 0x4, offset = 0x4, fixed_abs, tag = 'smem constant byte address 0x4 - core index']
  #allocation1 [shape = 'u32[144,128]{1,0:T(1,128)}', space=vmem, size = 0x12000, scoped, tag = 'internal scratch']
  %s0 = inlined_call_operand.hbm [shape: f32[2,32], index: 0, kind: input, shape index: {}]
  %s1 = inlined_call_operand.hbm [shape: bf16[32,256], index: 1, kind: input, shape index: {}]
  %s2 = inlined_call_operand.vmem [shape: f32[1,256], index: 2, kind: input, shape index: {}]
  %s3 = inlined_call_operand.hbm [shape: bf16[256,128], index: 3, kind: input, shape index: {}]
  %s4 = inlined_call_operand.vmem [shape: f32[1,128], index: 4, kind: input, shape index: {}]
  %s5 = inlined_call_operand.hbm [shape: bf16[2,128], index: 5, kind: output, shape index: {}]
  %s6 = sld [smem:[#allocation0]]
  $region42: #{tpu_custom_call.1} parent=0
    _
  %s8 = ssub.s32 1, %s6
  %s9 = scalar_select 0, %s8, %s6
  $region1: #{tpu_custom_call.1} parent=0
    #allocation2 [shape = 'u8[1024]{0}', space=vmem, size = 0x400, scoped, tag = 'input window, operand 0, single buffered']
    #allocation3 [shape = 's32[1]{0}', space=sflag, size = 0x4, scoped, tag = 'scoped memory for tpu_custom_call.1']
    #allocation4 [shape = 's32[1]{0}', space=sflag, size = 0x4, scoped, tag = 'scoped memory for tpu_custom_call.1']
    #allocation5 [shape = 'u8[16384]{0}', space=vmem, size = 0x4000, scoped, tag = 'input window, operand 1, single buffered']
    #allocation6 [shape = 's32[1]{0}', space=sflag, size = 0x4, scoped, tag = 'scoped memory for tpu_custom_call.1']
    #allocation7 [shape = 'u8[65536]{0}', space=vmem, size = 0x10000, scoped, tag = 'input window, operand 3, single buffered']
    #allocation8 [shape = 'u8[512]{0}', space=vmem, size = 0x400, scoped, tag = 'output window, operand 0, single buffered']
    %10 = vsyncpa [#allocation3], 0
    %11 = vsyncpa [#allocation6], 0
    %12 = vsyncpa [#allocation4], 0
    // Predicated region
    $region2: #{tpu_custom_call.1} parent=1 // pred_check
      _
    $region3: #{tpu_custom_call.1} parent=1 // pred_check_branch
      %14 = sbr.rel (0) target = $region5
    $region4: #{tpu_custom_call.1} parent=1 // pred_region
      %s16 = ssub.s32 32, 32
      %17 = vsyncadd [#allocation3], %s16
      %s19 = sshll.u32 [#allocation2], 4
      %s20 = int_to_ptr.vmem [resolvable:$true] %s19
      %22 = dma.hbm_to_vmem [thread:$0]  %s0, 32, %s20, [#allocation3]
    $region5: #{tpu_custom_call.1} parent=1 // pred_fallthru
      _
    // Predicated region
    $region6: #{tpu_custom_call.1} parent=1 // pred_check
      _
    $region7: #{tpu_custom_call.1} parent=1 // pred_check_branch
      %24 = sbr.rel (0) target = $region9
    $region8: #{tpu_custom_call.1} parent=1 // pred_region
      %s26 = ssub.s32 512, 512
      %27 = vsyncadd [#allocation6], %s26
      %s28 = sshll.u32 [#allocation5], 4
      %s29 = int_to_ptr.vmem [resolvable:$true] %s28
      %34 = dma.hbm_to_vmem [thread:$0]  %s1, 512, %s29, [#allocation6], 128, 128, 8
    $region9: #{tpu_custom_call.1} parent=1 // pred_fallthru
      _
    // Predicated region
    $region10: #{tpu_custom_call.1} parent=1 // pred_check
      _
    $region11: #{tpu_custom_call.1} parent=1 // pred_check_branch
      %36 = sbr.rel (0) target = $region13
    $region12: #{tpu_custom_call.1} parent=1 // pred_region
      _
    $region13: #{tpu_custom_call.1} parent=1 // pred_fallthru
      _
    // Predicated region
    $region14: #{tpu_custom_call.1} parent=1 // pred_check
      _
    $region15: #{tpu_custom_call.1} parent=1 // pred_check_branch
      %38 = sbr.rel (0) target = $region17
    $region16: #{tpu_custom_call.1} parent=1 // pred_region
      %s40 = ssub.s32 2048, 2048
      %41 = vsyncadd [#allocation6], %s40
      %s42 = sshll.u32 [#allocation7], 4
      %s43 = int_to_ptr.vmem [resolvable:$true] %s42
      %48 = dma.hbm_to_vmem [thread:$0]  %s3, 2048, %s43, [#allocation6], 64, 64, 4
    $region17: #{tpu_custom_call.1} parent=1 // pred_fallthru
      _
    // Predicated region
    $region18: #{tpu_custom_call.1} parent=1 // pred_check
      _
    $region19: #{tpu_custom_call.1} parent=1 // pred_check_branch
      %50 = sbr.rel (0) target = $region21
    $region20: #{tpu_custom_call.1} parent=1 // pred_region
      _
    $region21: #{tpu_custom_call.1} parent=1 // pred_fallthru
      _
    // Predicated region
    $region22: #{tpu_custom_call.1} parent=1 // pred_check
      _
    $region23: #{tpu_custom_call.1} parent=1 // pred_check_branch
      %52 = sbr.rel (0) target = $region25
    $region24: #{tpu_custom_call.1} parent=1 // pred_region
      %53 = dma.done [#allocation3], 32
    $region25: #{tpu_custom_call.1} parent=1 // pred_fallthru
      _
    // Predicated region
    $region26: #{tpu_custom_call.1} parent=1 // pred_check
      _
    $region27: #{tpu_custom_call.1} parent=1 // pred_check_branch
      %55 = sbr.rel (0) target = $region29
    $region28: #{tpu_custom_call.1} parent=1 // pred_region
      %56 = dma.done [#allocation6], 512
    $region29: #{tpu_custom_call.1} parent=1 // pred_fallthru
      _
    // Predicated region
    $region30: #{tpu_custom_call.1} parent=1 // pred_check
      _
    $region31: #{tpu_custom_call.1} parent=1 // pred_check_branch
      %58 = sbr.rel (0) target = $region33
    $region32: #{tpu_custom_call.1} parent=1 // pred_region
      %59 = dma.done [#allocation6], 2048
    $region33: #{tpu_custom_call.1} parent=1 // pred_fallthru
      _
    %v61 = vld [vmem:[#allocation2] sm:$0x3]
    %vm62 = vcmask 254976
    %v63 = vsel %vm62, %v61, 0.0
    %64 = vadd.xlane.f32.xlu0 %v63
    %v65 = vpop.xlane.xlu0 %64
    %v66 = vmul.f32 %v65, 0.03125
    %v67 = vsub.f32 %v61, %v66
    %v68 = vmul.f32 %v67, %v67
    %v69 = vsel %vm62, %v68, 0.0
    %70 = vadd.xlane.f32.xlu0 %v69
    %v71 = vpop.xlane.xlu0 %70
    %v72 = vmul.f32 %v71, 0.03125
    %v73 = vadd.f32 %v72, 1e-05
    %v74 = vrsqrt.pop %v73
    %v75 = vmul.f32 %v67, %v74
    %v76 = vpack.c.bf16 %v75, %v75
    %v77 = vld [vmem:[#allocation5] sm:$0xff]
    %v78 = vld [vmem:[#allocation5 + $0x8] sm:$0xff]
    %v79 = vld [vmem:[#allocation5 + $0x10] sm:$0xff]
    %v80 = vld [vmem:[#allocation5 + $0x18] sm:$0xff]
    %v81 = vld [vmem:[%s2] sm:$0x3]
    %v83 = vlaneseq
    %v84 = vshrl.u32 %v83, 7
    %v85 = vsub.s32 0, %v84
    %v86 = vrot.slane %v81, %v85
    %v87 = vlaneseq
    %v88 = vshrl.u32 %v87, 7
    %v89 = vsub.s32 1, %v88
    %v90 = vrot.slane %v81, %v89
    %v97 = vunpack.c.l.b16 %v77
    %v98 = vunpack.c.h.b16 %v77
    %v99 = vunpack.c.l.b16 %v78
    %v100 = vunpack.c.h.b16 %v78
    %v101 = vunpack.c.l.b16 %v79
    %v102 = vunpack.c.h.b16 %v79
    %v103 = vunpack.c.l.b16 %v80
    %v104 = vunpack.c.h.b16 %v80
    %v105 = vpack.c.b16 %v99, %v97
    %v106 = vpack.c.b16 %v100, %v98
    %v107 = vpack.c.b16 %v103, %v101
    %v108 = vpack.c.b16 %v104, %v102
    %vm113 = vcmask 261120
    %v115 = vsel %vm113, %v76, 0
    %117 = vmatprep.subr.bf16.mxu0 %v106
    %118 = vmatpush1.bf16.msra.mxu0 %v105
    %119 = vmatprep.subr.bf16.mxu0 %v108
    %120 = vmatpush1.bf16.msra.mxu0 %v107
    %121 = vmatprep.subr.bf16.mxu0 0
    %122 = vmatpush1.bf16.msra.mxu0 0
    %123 = vmatprep.subr.bf16.mxu0 0
    %124 = vmatpush1.bf16.msra.mxu0 0
    %125 = vmatprep.subr.bf16.mxu0 0
    %126 = vmatpush1.bf16.msra.mxu0 0
    %127 = vmatprep.subr.bf16.mxu0 0
    %128 = vmatpush1.bf16.msra.mxu0 0
    %129 = vmatprep.subr.bf16.mxu0 0
    %130 = vmatpush1.bf16.msra.mxu0 0
    %131 = vmatprep.subr.bf16.mxu0 0
    %132 = vmatpush1.bf16.msra.mxu0 0
    %133 = vmatprep.subr.bf16.mxu0 0
    %134 = vmatpush1.bf16.msra.mxu0 0
    %135 = vmatprep.subr.bf16.mxu0 0
    %136 = vmatpush1.bf16.msra.mxu0 0
    %137 = vmatprep.subr.bf16.mxu0 0
    %138 = vmatpush1.bf16.msra.mxu0 0
    %139 = vmatprep.subr.bf16.mxu0 0
    %140 = vmatpush1.bf16.msra.mxu0 0
    %141 = vmatprep.subr.bf16.mxu0 0
    %142 = vmatpush1.bf16.msra.mxu0 0
    %143 = vmatprep.subr.bf16.mxu0 0
    %144 = vmatpush1.bf16.msra.mxu0 0
    %145 = vmatprep.subr.bf16.mxu0 0
    %146 = vmatpush1.bf16.msra.mxu0 0
    %147 = vmatprep.subr.bf16.mxu0 0
    %148 = vmatpush1.bf16.msra.mxu0 0
    %149 = vmatprep.mubr.bf16.mxu0 0
    %150 = vmatmul.mubr.bf16.gmra.mrb[0].mxu0 %v115
    %v151 = vpop.f32.mrb[0].mxu0
    %v152 = vadd.f32 %v86, %v151
    %v153 = vpop.f32.mrb[0].mxu0
    %v154 = vadd.f32 %v90, %v153
    %v155 = vpop.f32.mrb[0].mxu0
    %v156 = vpop.f32.mrb[0].mxu0
    %157 = vdwg.mxu0
    %v158 = vxor.u32 %v152, 2147483648
    %v159 = vxor.u32 %v154, 2147483648
    %v160 = vmul.f32 %v158, 1.442695
    %v161 = vpow.pop %v160
    %v162 = vmul.f32 %v159, 1.442695
    %v163 = vpow.pop %v162
    %v164 = vadd.f32 %v161, 1.0
    %v165 = vadd.f32 %v163, 1.0
    %v166 = vrcp.pop %v164
    %v167 = vmul.f32 1.0, %v166
    %v168 = vrcp.pop %v165
    %v169 = vmul.f32 1.0, %v168
    %v170 = vmul.f32 %v152, %v167
    %v171 = vmul.f32 %v154, %v169
    %v172 = vpack.c.bf16 %v170, %v170
    %v173 = vpack.c.bf16 %v171, %v171
    %v174 = vld [vmem:[#allocation7] sm:$0xf]
    %v175 = vld [vmem:[#allocation7 + $0x4] sm:$0xf]
    %v176 = vld [vmem:[#allocation7 + $0x8] sm:$0xf]
    %v177 = vld [vmem:[#allocation7 + $0xc] sm:$0xf]
    %v178 = vld [vmem:[#allocation7 + $0x10] sm:$0xf]
    %v179 = vld [vmem:[#allocation7 + $0x14] sm:$0xf]
    %v180 = vld [vmem:[#allocation7 + $0x18] sm:$0xf]
    %v181 = vld [vmem:[#allocation7 + $0x1c] sm:$0xf]
    %v182 = vld [vmem:[#allocation7 + $0x20] sm:$0xf]
    %v183 = vld [vmem:[#allocation7 + $0x24] sm:$0xf]
    %v184 = vld [vmem:[#allocation7 + $0x28] sm:$0xf]
    %v185 = vld [vmem:[#allocation7 + $0x2c] sm:$0xf]
    %v186 = vld [vmem:[#allocation7 + $0x30] sm:$0xf]
    %v187 = vld [vmem:[#allocation7 + $0x34] sm:$0xf]
    %v188 = vld [vmem:[#allocation7 + $0x38] sm:$0xf]
    %v189 = vld [vmem:[#allocation7 + $0x3c] sm:$0xf]
    %v190 = vld [vmem:[#allocation7 + $0x40] sm:$0xf]
    %v191 = vld [vmem:[#allocation7 + $0x44] sm:$0xf]
    %v192 = vld [vmem:[#allocation7 + $0x48] sm:$0xf]
    %v193 = vld [vmem:[#allocation7 + $0x4c] sm:$0xf]
    %v194 = vld [vmem:[#allocation7 + $0x50] sm:$0xf]
    %v195 = vld [vmem:[#allocation7 + $0x54] sm:$0xf]
    %v196 = vld [vmem:[#allocation7 + $0x58] sm:$0xf]
    %v197 = vld [vmem:[#allocation7 + $0x5c] sm:$0xf]
    %v198 = vld [vmem:[#allocation7 + $0x60] sm:$0xf]
    %v199 = vld [vmem:[#allocation7 + $0x64] sm:$0xf]
    %v200 = vld [vmem:[#allocation7 + $0x68] sm:$0xf]
    %v201 = vld [vmem:[#allocation7 + $0x6c] sm:$0xf]
    %v202 = vld [vmem:[#allocation7 + $0x70] sm:$0xf]
    %v203 = vld [vmem:[#allocation7 + $0x74] sm:$0xf]
    %v204 = vld [vmem:[#allocation7 + $0x78] sm:$0xf]
    %v205 = vld [vmem:[#allocation7 + $0x7c] sm:$0xf]
    %v206 = vld [vmem:[%s4] sm:$0x1]
    %v208 = vlaneseq
    %v209 = vshrl.u32 %v208, 7
    %v210 = vsub.s32 0, %v209
    %v211 = vrot.slane %v206, %v210
    %v245 = vunpack.c.l.b16 %v174
    %v246 = vunpack.c.l.b16 %v175
    %v247 = vunpack.c.l.b16 %v176
    %v248 = vunpack.c.l.b16 %v177
    %v249 = vunpack.c.l.b16 %v178
    %v250 = vunpack.c.l.b16 %v179
    %v251 = vunpack.c.l.b16 %v180
    %v252 = vunpack.c.l.b16 %v181
    %v253 = vunpack.c.l.b16 %v182
    %v254 = vunpack.c.l.b16 %v183
    %v255 = vunpack.c.l.b16 %v184
    %v256 = vunpack.c.l.b16 %v185
    %v257 = vunpack.c.l.b16 %v186
    %v258 = vunpack.c.l.b16 %v187
    %v259 = vunpack.c.l.b16 %v188
    %v260 = vunpack.c.l.b16 %v189
    %v261 = vunpack.c.l.b16 %v190
    %v262 = vunpack.c.l.b16 %v191
    %v263 = vunpack.c.l.b16 %v192
    %v264 = vunpack.c.l.b16 %v193
    %v265 = vunpack.c.l.b16 %v194
    %v266 = vunpack.c.l.b16 %v195
    %v267 = vunpack.c.l.b16 %v196
    %v268 = vunpack.c.l.b16 %v197
    %v269 = vunpack.c.l.b16 %v198
    %v270 = vunpack.c.l.b16 %v199
    %v271 = vunpack.c.l.b16 %v200
    %v272 = vunpack.c.l.b16 %v201
    %v273 = vunpack.c.l.b16 %v202
    %v274 = vunpack.c.l.b16 %v203
    %v275 = vunpack.c.l.b16 %v204
    %v276 = vunpack.c.l.b16 %v205
    %v277 = vpack.c.b16 %v246, %v245
    %v278 = vpack.c.b16 %v248, %v247
    %v279 = vpack.c.b16 %v250, %v249
    %v280 = vpack.c.b16 %v252, %v251
    %v281 = vpack.c.b16 %v254, %v253
    %v282 = vpack.c.b16 %v256, %v255
    %v283 = vpack.c.b16 %v258, %v257
    %v284 = vpack.c.b16 %v260, %v259
    %v285 = vpack.c.b16 %v262, %v261
    %v286 = vpack.c.b16 %v264, %v263
    %v287 = vpack.c.b16 %v266, %v265
    %v288 = vpack.c.b16 %v268, %v267
    %v289 = vpack.c.b16 %v270, %v269
    %v290 = vpack.c.b16 %v272, %v271
    %v291 = vpack.c.b16 %v274, %v273
    %v292 = vpack.c.b16 %v276, %v275
    %309 = vmatprep.subr.bf16.mxu0 0
    %310 = vmatpush1.bf16.msra.mxu0 %v277
    %311 = vmatprep.subr.bf16.mxu0 0
    %312 = vmatpush1.bf16.msra.mxu0 %v278
    %313 = vmatprep.subr.bf16.mxu0 0
    %314 = vmatpush1.bf16.msra.mxu0 %v279
    %315 = vmatprep.subr.bf16.mxu0 0
    %316 = vmatpush1.bf16.msra.mxu0 %v280
    %317 = vmatprep.subr.bf16.mxu0 0
    %318 = vmatpush1.bf16.msra.mxu0 %v281
    %319 = vmatprep.subr.bf16.mxu0 0
    %320 = vmatpush1.bf16.msra.mxu0 %v282
    %321 = vmatprep.subr.bf16.mxu0 0
    %322 = vmatpush1.bf16.msra.mxu0 %v283
    %323 = vmatprep.subr.bf16.mxu0 0
    %324 = vmatpush1.bf16.msra.mxu0 %v284
    %325 = vmatprep.subr.bf16.mxu0 0
    %326 = vmatpush1.bf16.msra.mxu0 %v285
    %327 = vmatprep.subr.bf16.mxu0 0
    %328 = vmatpush1.bf16.msra.mxu0 %v286
    %329 = vmatprep.subr.bf16.mxu0 0
    %330 = vmatpush1.bf16.msra.mxu0 %v287
    %331 = vmatprep.subr.bf16.mxu0 0
    %332 = vmatpush1.bf16.msra.mxu0 %v288
    %333 = vmatprep.subr.bf16.mxu0 0
    %334 = vmatpush1.bf16.msra.mxu0 %v289
    %335 = vmatprep.subr.bf16.mxu0 0
    %336 = vmatpush1.bf16.msra.mxu0 %v290
    %337 = vmatprep.subr.bf16.mxu0 0
    %338 = vmatpush1.bf16.msra.mxu0 %v291
    %339 = vmatprep.subr.bf16.mxu0 0
    %340 = vmatpush1.bf16.msra.mxu0 %v292
    %341 = vmatprep.mubr.bf16.mxu0 %v173
    %342 = vmatmul.mubr.bf16.gmra.mrb[0].mxu0 %v172
    %v343 = vpop.f32.mrb[0].mxu0
    %v344 = vadd.f32 %v211, %v343
    %v345 = vpop.f32.mrb[0].mxu0
    %v346 = vpop.f32.mrb[0].mxu0
    %v347 = vpop.f32.mrb[0].mxu0
    %348 = vdwg.mxu0
    %v349 = vpack.c.bf16 %v344, %v344
    %350 = vst [vmem:[#allocation8] sm:$0x1] %v349
    // Predicated region
    $region34: #{tpu_custom_call.1} parent=1 // pred_check
      _
    $region35: #{tpu_custom_call.1} parent=1 // pred_check_branch
      %352 = sbr.rel (0) target = $region37
    $region36: #{tpu_custom_call.1} parent=1 // pred_region
      %s354 = ssub.s32 16, 16
      %355 = vsyncadd [#allocation4], %s354
      %s357 = sshll.u32 [#allocation8], 4
      %s358 = int_to_ptr.vmem [resolvable:$true] %s357
      %360 = dma.vmem_to_hbm [thread:$0]  %s358, 16, %s5, [#allocation4]
    $region37: #{tpu_custom_call.1} parent=1 // pred_fallthru
      _
    // Predicated region
    $region38: #{tpu_custom_call.1} parent=1 // pred_check
      _
    $region39: #{tpu_custom_call.1} parent=1 // pred_check_branch
      %362 = sbr.rel (0) target = $region41
    $region40: #{tpu_custom_call.1} parent=1 // pred_region
      %363 = dma.done [#allocation4], 16
    $region41: #{tpu_custom_call.1} parent=1 // pred_fallthru
      _
    %364 = vsyncpa [#allocation3], 1
    %365 = vsyncpa [#allocation6], 1
    %366 = vsyncpa [#allocation4], 1

// kernel: tpu_custom_call.1
$region0: #{tpu_custom_call.1}
  #allocation0 [shape = 'u32[]', space=smem, size = 0x4, offset = 0x4, fixed_abs, tag = 'smem constant byte address 0x4 - core index']
  #allocation1 [shape = 'u32[144,128]{1,0:T(1,128)}', space=vmem, size = 0x12000, scoped, tag = 'internal scratch']
  %s0 = inlined_call_operand.hbm [shape: f32[2,32], index: 0, kind: input, shape index: {}]
  %s1 = inlined_call_operand.hbm [shape: bf16[32,256], index: 1, kind: input, shape index: {}]
  %s2 = inlined_call_operand.vmem [shape: f32[1,256], index: 2, kind: input, shape index: {}]
  %s3 = inlined_call_operand.hbm [shape: bf16[256,128], index: 3, kind: input, shape index: {}]
  %s4 = inlined_call_operand.vmem [shape: f32[1,128], index: 4, kind: input, shape index: {}]
  %s5 = inlined_call_operand.hbm [shape: bf16[2,128], index: 5, kind: output, shape index: {}]
  %s6 = sld [smem:[#allocation0]]
  $region42: #{tpu_custom_call.1} parent=0
    _
  %s8 = ssub.s32 1, %s6
  %s9 = scalar_select 0, %s8, %s6
  $region1: #{tpu_custom_call.1} parent=0
    #allocation2 [shape = 'u8[1024]{0}', space=vmem, size = 0x400, scoped, tag = 'input window, operand 0, single buffered']
    #allocation3 [shape = 's32[1]{0}', space=sflag, size = 0x4, scoped, tag = 'scoped memory for tpu_custom_call.1']
    #allocation4 [shape = 's32[1]{0}', space=sflag, size = 0x4, scoped, tag = 'scoped memory for tpu_custom_call.1']
    #allocation5 [shape = 'u8[16384]{0}', space=vmem, size = 0x4000, scoped, tag = 'input window, operand 1, single buffered']
    #allocation6 [shape = 's32[1]{0}', space=sflag, size = 0x4, scoped, tag = 'scoped memory for tpu_custom_call.1']
    #allocation7 [shape = 'u8[65536]{0}', space=vmem, size = 0x10000, scoped, tag = 'input window, operand 3, single buffered']
    #allocation8 [shape = 'u8[512]{0}', space=vmem, size = 0x400, scoped, tag = 'output window, operand 0, single buffered']
    %10 = vsyncpa [#allocation3], 0
    %11 = vsyncpa [#allocation6], 0
    %12 = vsyncpa [#allocation4], 0
    // Predicated region
    $region2: #{tpu_custom_call.1} parent=1 // pred_check
      _
    $region3: #{tpu_custom_call.1} parent=1 // pred_check_branch
      %14 = sbr.rel (0) target = $region5
    $region4: #{tpu_custom_call.1} parent=1 // pred_region
      %s16 = ssub.s32 32, 32
      %17 = vsyncadd [#allocation3], %s16
      %s19 = sshll.u32 [#allocation2], 4
      %s20 = int_to_ptr.vmem [resolvable:$true] %s19
      %22 = dma.hbm_to_vmem [thread:$0]  %s0, 32, %s20, [#allocation3]
    $region5: #{tpu_custom_call.1} parent=1 // pred_fallthru
      _
    // Predicated region
    $region6: #{tpu_custom_call.1} parent=1 // pred_check
      _
    $region7: #{tpu_custom_call.1} parent=1 // pred_check_branch
      %24 = sbr.rel (0) target = $region9
    $region8: #{tpu_custom_call.1} parent=1 // pred_region
      %s26 = ssub.s32 512, 512
      %27 = vsyncadd [#allocation6], %s26
      %s28 = sshll.u32 [#allocation5], 4
      %s29 = int_to_ptr.vmem [resolvable:$true] %s28
      %34 = dma.hbm_to_vmem [thread:$0]  %s1, 512, %s29, [#allocation6], 128, 128, 8
    $region9: #{tpu_custom_call.1} parent=1 // pred_fallthru
      _
    // Predicated region
    $region10: #{tpu_custom_call.1} parent=1 // pred_check
      _
    $region11: #{tpu_custom_call.1} parent=1 // pred_check_branch
      %36 = sbr.rel (0) target = $region13
    $region12: #{tpu_custom_call.1} parent=1 // pred_region
      _
    $region13: #{tpu_custom_call.1} parent=1 // pred_fallthru
      _
    // Predicated region
    $region14: #{tpu_custom_call.1} parent=1 // pred_check
      _
    $region15: #{tpu_custom_call.1} parent=1 // pred_check_branch
      %38 = sbr.rel (0) target = $region17
    $region16: #{tpu_custom_call.1} parent=1 // pred_region
      %s40 = ssub.s32 2048, 2048
      %41 = vsyncadd [#allocation6], %s40
      %s42 = sshll.u32 [#allocation7], 4
      %s43 = int_to_ptr.vmem [resolvable:$true] %s42
      %48 = dma.hbm_to_vmem [thread:$0]  %s3, 2048, %s43, [#allocation6], 64, 64, 4
    $region17: #{tpu_custom_call.1} parent=1 // pred_fallthru
      _
    // Predicated region
    $region18: #{tpu_custom_call.1} parent=1 // pred_check
      _
    $region19: #{tpu_custom_call.1} parent=1 // pred_check_branch
      %50 = sbr.rel (0) target = $region21
    $region20: #{tpu_custom_call.1} parent=1 // pred_region
      _
    $region21: #{tpu_custom_call.1} parent=1 // pred_fallthru
      _
    // Predicated region
    $region22: #{tpu_custom_call.1} parent=1 // pred_check
      _
    $region23: #{tpu_custom_call.1} parent=1 // pred_check_branch
      %52 = sbr.rel (0) target = $region25
    $region24: #{tpu_custom_call.1} parent=1 // pred_region
      %53 = dma.done [#allocation3], 32
    $region25: #{tpu_custom_call.1} parent=1 // pred_fallthru
      _
    // Predicated region
    $region26: #{tpu_custom_call.1} parent=1 // pred_check
      _
    $region27: #{tpu_custom_call.1} parent=1 // pred_check_branch
      %55 = sbr.rel (0) target = $region29
    $region28: #{tpu_custom_call.1} parent=1 // pred_region
      %56 = dma.done [#allocation6], 512
    $region29: #{tpu_custom_call.1} parent=1 // pred_fallthru
      _
    // Predicated region
    $region30: #{tpu_custom_call.1} parent=1 // pred_check
      _
    $region31: #{tpu_custom_call.1} parent=1 // pred_check_branch
      %58 = sbr.rel (0) target = $region33
    $region32: #{tpu_custom_call.1} parent=1 // pred_region
      %59 = dma.done [#allocation6], 2048
    $region33: #{tpu_custom_call.1} parent=1 // pred_fallthru
      _
    %v61 = vld [vmem:[#allocation2] sm:$0x3]
    %vm62 = vcmask 254976
    %v63 = vsel %vm62, %v61, 0.0
    %64 = vadd.xlane.f32.xlu0 %v63
    %v65 = vpop.xlane.xlu0 %64
    %v66 = vmul.f32 %v65, 0.03125
    %v67 = vsub.f32 %v61, %v66
    %v68 = vmul.f32 %v67, %v67
    %v69 = vsel %vm62, %v68, 0.0
    %70 = vadd.xlane.f32.xlu0 %v69
    %v71 = vpop.xlane.xlu0 %70
    %v72 = vmul.f32 %v71, 0.03125
    %v73 = vadd.f32 %v72, 1e-05
    %v74 = vrsqrt.pop %v73
    %v75 = vmul.f32 %v67, %v74
    %v76 = vpack.c.bf16 %v75, %v75
    %v77 = vld [vmem:[#allocation5] sm:$0xff]
    %v78 = vld [vmem:[#allocation5 + $0x8] sm:$0xff]
    %v79 = vld [vmem:[#allocation5 + $0x10] sm:$0xff]
    %v80 = vld [vmem:[#allocation5 + $0x18] sm:$0xff]
    %v81 = vld [vmem:[%s2] sm:$0x3]
    %v83 = vlaneseq
    %v84 = vshrl.u32 %v83, 7
    %v85 = vsub.s32 0, %v84
    %v86 = vrot.slane %v81, %v85
    %v87 = vlaneseq
    %v88 = vshrl.u32 %v87, 7
    %v89 = vsub.s32 1, %v88
    %v90 = vrot.slane %v81, %v89
    %v97 = vunpack.c.l.b16 %v77
    %v98 = vunpack.c.h.b16 %v77
    %v99 = vunpack.c.l.b16 %v78
    %v100 = vunpack.c.h.b16 %v78
    %v101 = vunpack.c.l.b16 %v79
    %v102 = vunpack.c.h.b16 %v79
    %v103 = vunpack.c.l.b16 %v80
    %v104 = vunpack.c.h.b16 %v80
    %v105 = vpack.c.b16 %v99, %v97
    %v106 = vpack.c.b16 %v100, %v98
    %v107 = vpack.c.b16 %v103, %v101
    %v108 = vpack.c.b16 %v104, %v102
    %vm113 = vcmask 261120
    %v115 = vsel %vm113, %v76, 0
    %117 = vmatprep.subr.bf16.mxu0 %v106
    %118 = vmatpush1.bf16.msra.mxu0 %v105
    %119 = vmatprep.subr.bf16.mxu0 %v108
    %120 = vmatpush1.bf16.msra.mxu0 %v107
    %121 = vmatprep.subr.bf16.mxu0 0
    %122 = vmatpush1.bf16.msra.mxu0 0
    %123 = vmatprep.subr.bf16.mxu0 0
    %124 = vmatpush1.bf16.msra.mxu0 0
    %125 = vmatprep.subr.bf16.mxu0 0
    %126 = vmatpush1.bf16.msra.mxu0 0
    %127 = vmatprep.subr.bf16.mxu0 0
    %128 = vmatpush1.bf16.msra.mxu0 0
    %129 = vmatprep.subr.bf16.mxu0 0
    %130 = vmatpush1.bf16.msra.mxu0 0
    %131 = vmatprep.subr.bf16.mxu0 0
    %132 = vmatpush1.bf16.msra.mxu0 0
    %133 = vmatprep.subr.bf16.mxu0 0
    %134 = vmatpush1.bf16.msra.mxu0 0
    %135 = vmatprep.subr.bf16.mxu0 0
    %136 = vmatpush1.bf16.msra.mxu0 0
    %137 = vmatprep.subr.bf16.mxu0 0
    %138 = vmatpush1.bf16.msra.mxu0 0
    %139 = vmatprep.subr.bf16.mxu0 0
    %140 = vmatpush1.bf16.msra.mxu0 0
    %141 = vmatprep.subr.bf16.mxu0 0
    %142 = vmatpush1.bf16.msra.mxu0 0
    %143 = vmatprep.subr.bf16.mxu0 0
    %144 = vmatpush1.bf16.msra.mxu0 0
    %145 = vmatprep.subr.bf16.mxu0 0
    %146 = vmatpush1.bf16.msra.mxu0 0
    %147 = vmatprep.subr.bf16.mxu0 0
    %148 = vmatpush1.bf16.msra.mxu0 0
    %149 = vmatprep.mubr.bf16.mxu0 0
    %150 = vmatmul.mubr.bf16.gmra.mrb[0].mxu0 %v115
    %v151 = vpop.f32.mrb[0].mxu0
    %v152 = vadd.f32 %v86, %v151
    %v153 = vpop.f32.mrb[0].mxu0
    %v154 = vadd.f32 %v90, %v153
    %v155 = vpop.f32.mrb[0].mxu0
    %v156 = vpop.f32.mrb[0].mxu0
    %157 = vdwg.mxu0
    %v158 = vxor.u32 %v152, 2147483648
    %v159 = vxor.u32 %v154, 2147483648
    %v160 = vmul.f32 %v158, 1.442695
    %v161 = vpow.pop %v160
    %v162 = vmul.f32 %v159, 1.442695
    %v163 = vpow.pop %v162
    %v164 = vadd.f32 %v161, 1.0
    %v165 = vadd.f32 %v163, 1.0
    %v166 = vrcp.pop %v164
    %v167 = vmul.f32 1.0, %v166
    %v168 = vrcp.pop %v165
    %v169 = vmul.f32 1.0, %v168
    %v170 = vmul.f32 %v152, %v167
    %v171 = vmul.f32 %v154, %v169
    %v172 = vpack.c.bf16 %v170, %v170
    %v173 = vpack.c.bf16 %v171, %v171
    %v174 = vld [vmem:[#allocation7] sm:$0xf]
    %v175 = vld [vmem:[#allocation7 + $0x4] sm:$0xf]
    %v176 = vld [vmem:[#allocation7 + $0x8] sm:$0xf]
    %v177 = vld [vmem:[#allocation7 + $0xc] sm:$0xf]
    %v178 = vld [vmem:[#allocation7 + $0x10] sm:$0xf]
    %v179 = vld [vmem:[#allocation7 + $0x14] sm:$0xf]
    %v180 = vld [vmem:[#allocation7 + $0x18] sm:$0xf]
    %v181 = vld [vmem:[#allocation7 + $0x1c] sm:$0xf]
    %v182 = vld [vmem:[#allocation7 + $0x20] sm:$0xf]
    %v183 = vld [vmem:[#allocation7 + $0x24] sm:$0xf]
    %v184 = vld [vmem:[#allocation7 + $0x28] sm:$0xf]
    %v185 = vld [vmem:[#allocation7 + $0x2c] sm:$0xf]
    %v186 = vld [vmem:[#allocation7 + $0x30] sm:$0xf]
    %v187 = vld [vmem:[#allocation7 + $0x34] sm:$0xf]
    %v188 = vld [vmem:[#allocation7 + $0x38] sm:$0xf]
    %v189 = vld [vmem:[#allocation7 + $0x3c] sm:$0xf]
    %v190 = vld [vmem:[#allocation7 + $0x40] sm:$0xf]
    %v191 = vld [vmem:[#allocation7 + $0x44] sm:$0xf]
    %v192 = vld [vmem:[#allocation7 + $0x48] sm:$0xf]
    %v193 = vld [vmem:[#allocation7 + $0x4c] sm:$0xf]
    %v194 = vld [vmem:[#allocation7 + $0x50] sm:$0xf]
    %v195 = vld [vmem:[#allocation7 + $0x54] sm:$0xf]
    %v196 = vld [vmem:[#allocation7 + $0x58] sm:$0xf]
    %v197 = vld [vmem:[#allocation7 + $0x5c] sm:$0xf]
    %v198 = vld [vmem:[#allocation7 + $0x60] sm:$0xf]
    %v199 = vld [vmem:[#allocation7 + $0x64] sm:$0xf]
    %v200 = vld [vmem:[#allocation7 + $0x68] sm:$0xf]
    %v201 = vld [vmem:[#allocation7 + $0x6c] sm:$0xf]
    %v202 = vld [vmem:[#allocation7 + $0x70] sm:$0xf]
    %v203 = vld [vmem:[#allocation7 + $0x74] sm:$0xf]
    %v204 = vld [vmem:[#allocation7 + $0x78] sm:$0xf]
    %v205 = vld [vmem:[#allocation7 + $0x7c] sm:$0xf]
    %v206 = vld [vmem:[%s4] sm:$0x1]
    %v208 = vlaneseq
    %v209 = vshrl.u32 %v208, 7
    %v210 = vsub.s32 0, %v209
    %v211 = vrot.slane %v206, %v210
    %v245 = vunpack.c.l.b16 %v174
    %v246 = vunpack.c.l.b16 %v175
    %v247 = vunpack.c.l.b16 %v176
    %v248 = vunpack.c.l.b16 %v177
    %v249 = vunpack.c.l.b16 %v178
    %v250 = vunpack.c.l.b16 %v179
    %v251 = vunpack.c.l.b16 %v180
    %v252 = vunpack.c.l.b16 %v181
    %v253 = vunpack.c.l.b16 %v182
    %v254 = vunpack.c.l.b16 %v183
    %v255 = vunpack.c.l.b16 %v184
    %v256 = vunpack.c.l.b16 %v185
    %v257 = vunpack.c.l.b16 %v186
    %v258 = vunpack.c.l.b16 %v187
    %v259 = vunpack.c.l.b16 %v188
    %v260 = vunpack.c.l.b16 %v189
    %v261 = vunpack.c.l.b16 %v190
    %v262 = vunpack.c.l.b16 %v191
    %v263 = vunpack.c.l.b16 %v192
    %v264 = vunpack.c.l.b16 %v193
    %v265 = vunpack.c.l.b16 %v194
    %v266 = vunpack.c.l.b16 %v195
    %v267 = vunpack.c.l.b16 %v196
    %v268 = vunpack.c.l.b16 %v197
    %v269 = vunpack.c.l.b16 %v198
    %v270 = vunpack.c.l.b16 %v199
    %v271 = vunpack.c.l.b16 %v200
    %v272 = vunpack.c.l.b16 %v201
    %v273 = vunpack.c.l.b16 %v202
    %v274 = vunpack.c.l.b16 %v203
    %v275 = vunpack.c.l.b16 %v204
    %v276 = vunpack.c.l.b16 %v205
    %v277 = vpack.c.b16 %v246, %v245
    %v278 = vpack.c.b16 %v248, %v247
    %v279 = vpack.c.b16 %v250, %v249
    %v280 = vpack.c.b16 %v252, %v251
    %v281 = vpack.c.b16 %v254, %v253
    %v282 = vpack.c.b16 %v256, %v255
    %v283 = vpack.c.b16 %v258, %v257
    %v284 = vpack.c.b16 %v260, %v259
    %v285 = vpack.c.b16 %v262, %v261
    %v286 = vpack.c.b16 %v264, %v263
    %v287 = vpack.c.b16 %v266, %v265
    %v288 = vpack.c.b16 %v268, %v267
    %v289 = vpack.c.b16 %v270, %v269
    %v290 = vpack.c.b16 %v272, %v271
    %v291 = vpack.c.b16 %v274, %v273
    %v292 = vpack.c.b16 %v276, %v275
    %309 = vmatprep.subr.bf16.mxu0 0
    %310 = vmatpush1.bf16.msra.mxu0 %v277
    %311 = vmatprep.subr.bf16.mxu0 0
    %312 = vmatpush1.bf16.msra.mxu0 %v278
    %313 = vmatprep.subr.bf16.mxu0 0
    %314 = vmatpush1.bf16.msra.mxu0 %v279
    %315 = vmatprep.subr.bf16.mxu0 0
    %316 = vmatpush1.bf16.msra.mxu0 %v280
    %317 = vmatprep.subr.bf16.mxu0 0
    %318 = vmatpush1.bf16.msra.mxu0 %v281
    %319 = vmatprep.subr.bf16.mxu0 0
    %320 = vmatpush1.bf16.msra.mxu0 %v282
    %321 = vmatprep.subr.bf16.mxu0 0
    %322 = vmatpush1.bf16.msra.mxu0 %v283
    %323 = vmatprep.subr.bf16.mxu0 0
    %324 = vmatpush1.bf16.msra.mxu0 %v284
    %325 = vmatprep.subr.bf16.mxu0 0
    %326 = vmatpush1.bf16.msra.mxu0 %v285
    %327 = vmatprep.subr.bf16.mxu0 0
    %328 = vmatpush1.bf16.msra.mxu0 %v286
    %329 = vmatprep.subr.bf16.mxu0 0
    %330 = vmatpush1.bf16.msra.mxu0 %v287
    %331 = vmatprep.subr.bf16.mxu0 0
    %332 = vmatpush1.bf16.msra.mxu0 %v288
    %333 = vmatprep.subr.bf16.mxu0 0
    %334 = vmatpush1.bf16.msra.mxu0 %v289
    %335 = vmatprep.subr.bf16.mxu0 0
    %336 = vmatpush1.bf16.msra.mxu0 %v290
    %337 = vmatprep.subr.bf16.mxu0 0
    %338 = vmatpush1.bf16.msra.mxu0 %v291
    %339 = vmatprep.subr.bf16.mxu0 0
    %340 = vmatpush1.bf16.msra.mxu0 %v292
    %341 = vmatprep.mubr.bf16.mxu0 %v173
    %342 = vmatmul.mubr.bf16.gmra.mrb[0].mxu0 %v172
    %v343 = vpop.f32.mrb[0].mxu0
    %v344 = vadd.f32 %v211, %v343
    %v345 = vpop.f32.mrb[0].mxu0
    %v346 = vpop.f32.mrb[0].mxu0
    %v347 = vpop.f32.mrb[0].mxu0
    %348 = vdwg.mxu0
    %v349 = vpack.c.bf16 %v344, %v344
    %350 = vst [vmem:[#allocation8] sm:$0x1] %v349
    // Predicated region
    $region34: #{tpu_custom_call.1} parent=1 // pred_check
      _
    $region35: #{tpu_custom_call.1} parent=1 // pred_check_branch
      %352 = sbr.rel (0) target = $region37
    $region36: #{tpu_custom_call.1} parent=1 // pred_region
      %s354 = ssub.s32 16, 16
      %355 = vsyncadd [#allocation4], %s354
      %s357 = sshll.u32 [#allocation8], 4
      %s358 = int_to_ptr.vmem [resolvable:$true] %s357
      %360 = dma.vmem_to_hbm [thread:$0]  %s358, 16, %s5, [#allocation4]
    $region37: #{tpu_custom_call.1} parent=1 // pred_fallthru
      _
    // Predicated region
    $region38: #{tpu_custom_call.1} parent=1 // pred_check
      _
    $region39: #{tpu_custom_call.1} parent=1 // pred_check_branch
      %362 = sbr.rel (0) target = $region41
    $region40: #{tpu_custom_call.1} parent=1 // pred_region
      %363 = dma.done [#allocation4], 16
    $region41: #{tpu_custom_call.1} parent=1 // pred_fallthru
      _
    %364 = vsyncpa [#allocation3], 1
    %365 = vsyncpa [#allocation6], 1
    %366 = vsyncpa [#allocation4], 1

</llo_original>
